<compile_context>
chip_gen: v7x
topology: tpu7x:2x2x1
jax: 0.10.0
libtpu: 0.0.40
codegen_flags: <defaults>
</compile_context>

<pallas_src>
import math
import functools

import numpy as np
import jax
import jax.numpy as jnp
from jax import lax
from jax.experimental import pallas as pl
from jax.experimental.pallas import tpu as pltpu


def _ghost_kernel(x_ref, w1_ref, b1_ref, dw_ref, b2_ref, mask_ref,
                  out1_ref, out2_ref, *, relu, dw_size, W):
    """One batch block (nb elements) per grid step.

    x_ref    : (nb, Cin, HW)   input, H*W flattened onto lanes
    w1_ref   : (Ci, Cin)       BN-folded primary 1x1 weights
    b1_ref   : (Ci, 1)         BN-folded bias
    dw_ref   : (k*k, Cn, 1)    BN-folded depthwise taps
    b2_ref   : (Cn, 1)         BN-folded bias
    mask_ref : (k*k, HW)       static 0/1 boundary masks per tap
    out1_ref : (nb, Ci, HW)    primary-conv output   (lane-dense full store)
    out2_ref : (nb, Cn, HW)    cheap-op output       (lane-dense full store)
    """
    nb = x_ref.shape[0]
    HW = x_ref.shape[2]
    Cn = dw_ref.shape[1]
    pad = dw_size // 2

    # Hoisted loads: read once per grid step, reused across the batch loop.
    w1 = w1_ref[...]
    b1 = b1_ref[...]
    b2 = b2_ref[...]
    dwt = dw_ref[...]            # (k*k, Cn, 1)
    masks = mask_ref[...]        # (k*k, HW)

    # Per-tap (shift, boundary-mask, per-channel weight), hoisted out of the
    # batch loop.  Center tap needs no mask.
    taps = []
    for dy in range(dw_size):
        for dx in range(dw_size):
            k = dy * dw_size + dx
            shift = (-((dy - pad) * W + (dx - pad))) % HW
            m = None if (dy == pad and dx == pad) else masks[k:k + 1, :]
            taps.append((shift, m, dwt[k]))

    for n in range(nb):
        # ---- primary_conv: channel matmul on the MXU + bias + ReLU --------
        y1 = jnp.dot(w1, x_ref[n], preferred_element_type=jnp.float32) + b1
        if relu:
            y1 = jnp.maximum(y1, 0.0)
        out1_ref[n] = y1.astype(out1_ref.dtype)

        # ---- cheap_operation: depthwise conv as masked lane rolls of y1 ---
        acc = jnp.zeros((Cn, HW), jnp.float32)
        for shift, m, wk in taps:
            t = y1 if shift == 0 else pltpu.roll(y1, shift=shift, axis=1)
            if m is not None:
                t = t * m                 # zero the wrapped-around positions
            acc = acc + t * wk            # wk: (Cn, 1) per-channel tap weight
        y2 = acc + b2
        if relu:
            y2 = jnp.maximum(y2, 0.0)
        out2_ref[n] = y2.astype(out2_ref.dtype)


def _pick_batch_block(n_batch, bytes_per_elem, budget_bytes=8 << 20):
    """Largest batch block that (a) divides N, (b) fits a double-buffered VMEM
    budget, and (c) leaves >= 2 grid steps when possible (v7x megacore)."""
    best = 1
    for nb in range(1, n_batch + 1):
        if n_batch % nb:
            continue
        if 2 * nb * bytes_per_elem > budget_bytes:
            continue
        if n_batch >= 2 and n_batch // nb < 2:
            continue
        best = nb
    return best


def ghost_module(x_nchw, params, *, oup, kernel_size=1, ratio=2, dw_size=3,
                 stride=1, relu=True, eps=1e-5):
    """GhostModule.forward.  x_nchw: (N, Cin, H, W) float32 (NCHW, like PyTorch)."""
    init_channels = math.ceil(oup / ratio)
    new_channels = oup - init_channels
    # TODO(synk): new_channels == 0 (Identity cheap_operation) path not wired up.
    assert new_channels > 0
    # TODO(synk): only the default 1x1 primary conv is implemented in-kernel.
    assert kernel_size == 1
    # TODO(synk): depthwise multiplier > 1 (ratio > 2 configs) not wired up.
    assert new_channels % init_channels == 0
    assert new_channels // init_channels == 1

    N, Cin, H, W = x_nchw.shape
    if stride > 1:   # 1x1 conv with stride == spatial subsampling (glue, not hot path)
        x_nchw = x_nchw[:, :, ::stride, ::stride]
        H, W = x_nchw.shape[2], x_nchw.shape[3]
    HW = H * W
    KK = dw_size * dw_size
    pad = dw_size // 2
    Ci, Cn = init_channels, new_channels

    # Stay NCHW; flattening H*W onto the lane axis is a free (metadata) reshape.
    x = x_nchw.reshape(N, Cin, HW).astype(jnp.float32)

    # Fold eval-mode BatchNorm scale into the conv weights; only a bias add
    # remains in-kernel.
    s1 = params["bn1_gamma"] / jnp.sqrt(params["bn1_var"] + eps)
    b1 = params["bn1_beta"] - params["bn1_mean"] * s1
    w1s = params["primary_w"][:, :, 0, 0] * s1[:, None]               # (Ci, Cin)

    s2 = params["bn2_gamma"] / jnp.sqrt(params["bn2_var"] + eps)
    b2 = params["bn2_beta"] - params["bn2_mean"] * s2
    dws = params["dw_w"][:, 0, :, :] * s2[:, None, None]              # (Cn, k, k)
    dws = jnp.transpose(dws.reshape(Cn, KK), (1, 0)).reshape(KK, Cn, 1)

    # Static 0/1 validity masks per tap over the flattened H*W lane axis
    # (mask out positions where the lane roll wrapped across a row / the image).
    hs, ws = np.arange(H), np.arange(W)
    masks_np = np.zeros((KK, HW), np.float32)
    for dy in range(dw_size):
        for dx in range(dw_size):
            oy, ox = dy - pad, dx - pad
            vh = (hs + oy >= 0) & (hs + oy < H)
            vw = (ws + ox >= 0) & (ws + ox < W)
            masks_np[dy * dw_size + dx] = (vh[:, None] & vw[None, :]).reshape(-1)
    masks = jnp.asarray(masks_np)

    # Batch tiling: biggest block within a VMEM budget, >= 2 parallel grid
    # steps when possible so both v7x TensorCores get work.
    bytes_per_elem = (Cin + oup) * HW * 4
    nb = _pick_batch_block(N, bytes_per_elem)
    grid = (N // nb,)

    const_bytes = (Ci * Cin + Ci + KK * Cn + Cn + KK * HW) * 4
    needed = 2 * 2 * nb * bytes_per_elem + 2 * const_bytes      # double-buffered
    vmem_limit = int(min(64 << 20, max(16 << 20, 4 * needed)))

    kern = functools.partial(_ghost_kernel, relu=relu, dw_size=dw_size, W=W)

    x1o, x2o = pl.pallas_call(
        kern,
        out_shape=(jax.ShapeDtypeStruct((N, Ci, HW), jnp.float32),
                   jax.ShapeDtypeStruct((N, Cn, HW), jnp.float32)),
        grid_spec=pltpu.PrefetchScalarGridSpec(
            num_scalar_prefetch=0,
            grid=grid,
            in_specs=[
                pl.BlockSpec((nb, Cin, HW), lambda n: (n, 0, 0)),
                pl.BlockSpec((Ci, Cin), lambda n: (0, 0)),
                pl.BlockSpec((Ci, 1), lambda n: (0, 0)),
                pl.BlockSpec((KK, Cn, 1), lambda n: (0, 0, 0)),
                pl.BlockSpec((Cn, 1), lambda n: (0, 0)),
                pl.BlockSpec((KK, HW), lambda n: (0, 0)),
            ],
            out_specs=[
                pl.BlockSpec((nb, Ci, HW), lambda n: (n, 0, 0)),
                pl.BlockSpec((nb, Cn, HW), lambda n: (n, 0, 0)),
            ],
        ),
        compiler_params=pltpu.CompilerParams(
            dimension_semantics=("parallel",),
            vmem_limit_bytes=vmem_limit),
    )(x, w1s, b1.reshape(-1, 1), dws, b2.reshape(-1, 1), masks)

    # cat([x1, x2], dim=1)[:, :oup] — the slice is a no-op since Ci + Cn == oup.
    out = jnp.concatenate([x1o, x2o], axis=1)
    return out.reshape(N, oup, H, W)


def _reference(x, params, *, oup, ratio=2, dw_size=3, relu=True, eps=1e-5):
    """Pure-JAX (XLA) reference of the PyTorch forward, NCHW, eval-mode BN."""
    Ci = math.ceil(oup / ratio)
    w1 = params["primary_w"][:, :, 0, 0]                    # (Ci, Cin)
    x1 = jnp.einsum('nchw,oc->nohw', x, w1)
    s1 = params["bn1_gamma"] / jnp.sqrt(params["bn1_var"] + eps)
    x1 = (x1 * s1[None, :, None, None]
          + (params["bn1_beta"] - params["bn1_mean"] * s1)[None, :, None, None])
    if relu:
        x1 = jnp.maximum(x1, 0.0)
    x2 = lax.conv_general_dilated(
        x1, params["dw_w"], window_strides=(1, 1),
        padding=[(dw_size // 2, dw_size // 2)] * 2,
        feature_group_count=Ci,
        dimension_numbers=('NCHW', 'OIHW', 'NCHW'))
    s2 = params["bn2_gamma"] / jnp.sqrt(params["bn2_var"] + eps)
    x2 = (x2 * s2[None, :, None, None]
          + (params["bn2_beta"] - params["bn2_mean"] * s2)[None, :, None, None])
    if relu:
        x2 = jnp.maximum(x2, 0.0)
    return jnp.concatenate([x1, x2], axis=1)[:, :oup]


if __name__ == "__main__":
    N, inp, oup, H, W = 2, 4, 8, 16, 16
    ratio, dw_size = 2, 3
    Ci = math.ceil(oup / ratio)
    Cn = oup - Ci

    key = jax.random.PRNGKey(0)
    ks = jax.random.split(key, 11)
    params = {
        "primary_w": 0.5 * jax.random.normal(ks[0], (Ci, inp, 1, 1), jnp.float32),
        "bn1_gamma": 1.0 + 0.1 * jax.random.normal(ks[1], (Ci,), jnp.float32),
        "bn1_beta":  0.1 * jax.random.normal(ks[2], (Ci,), jnp.float32),
        "bn1_mean":  0.1 * jax.random.normal(ks[3], (Ci,), jnp.float32),
        "bn1_var":   jax.random.uniform(ks[4], (Ci,), jnp.float32, 0.5, 1.5),
        "dw_w":      0.5 * jax.random.normal(ks[5], (Cn, 1, dw_size, dw_size),
                                             jnp.float32),
        "bn2_gamma": 1.0 + 0.1 * jax.random.normal(ks[6], (Cn,), jnp.float32),
        "bn2_beta":  0.1 * jax.random.normal(ks[7], (Cn,), jnp.float32),
        "bn2_mean":  0.1 * jax.random.normal(ks[8], (Cn,), jnp.float32),
        "bn2_var":   jax.random.uniform(ks[9], (Cn,), jnp.float32, 0.5, 1.5),
    }
    x = jax.random.normal(ks[10], (N, inp, H, W), jnp.float32)

    out = ghost_module(x, params, oup=oup, ratio=ratio, dw_size=dw_size)
    out = jax.block_until_ready(out)

    ref = _reference(x, params, oup=oup, ratio=ratio, dw_size=dw_size)
    np.testing.assert_allclose(np.asarray(out), np.asarray(ref),
                               rtol=1e-4, atol=1e-4)
    print("KERNEL_OK")
</pallas_src>

<mosaic_0001>
module attributes {stable_mosaic.version = 11 : i64} {
  func.func @_ghost_kernel(%arg0: i32, %arg1: memref<1x4x256xf32, #tpu.memory_space<vmem>>, %arg2: memref<4x4xf32, #tpu.memory_space<vmem>>, %arg3: memref<4x1xf32, #tpu.memory_space<vmem>>, %arg4: memref<9x4x1xf32, #tpu.memory_space<vmem>>, %arg5: memref<4x1xf32, #tpu.memory_space<vmem>>, %arg6: memref<9x256xf32, #tpu.memory_space<vmem>>, %arg7: memref<1x4x256xf32, #tpu.memory_space<vmem>>, %arg8: memref<1x4x256xf32, #tpu.memory_space<vmem>>) attributes {dimension_semantics = [#tpu.dimension_semantics<parallel>], iteration_bounds = array<i64: 2>, scalar_prefetch = 0 : i64, scratch_operands = 0 : i64, tpu.core_type = #tpu.core_type<tc>, window_params = [{transform_indices = @transform_0, window_bounds = array<i64: 1, 4, 256>}, {pipeline_mode = #tpu.pipeline_mode<synchronous>, transform_indices = @transform_1, window_bounds = array<i64: 4, 4>}, {pipeline_mode = #tpu.pipeline_mode<synchronous>, transform_indices = @transform_2, window_bounds = array<i64: 4, 1>}, {pipeline_mode = #tpu.pipeline_mode<synchronous>, transform_indices = @transform_3, window_bounds = array<i64: 9, 4, 1>}, {pipeline_mode = #tpu.pipeline_mode<synchronous>, transform_indices = @transform_4, window_bounds = array<i64: 4, 1>}, {pipeline_mode = #tpu.pipeline_mode<synchronous>, transform_indices = @transform_5, window_bounds = array<i64: 9, 256>}, {transform_indices = @transform_6, window_bounds = array<i64: 1, 4, 256>}, {transform_indices = @transform_7, window_bounds = array<i64: 1, 4, 256>}]} {
    %c0 = arith.constant 0 : index
    %c0_0 = arith.constant 0 : index
    %0 = vector.load %arg2[%c0, %c0_0] : memref<4x4xf32, #tpu.memory_space<vmem>>, vector<4x4xf32>
    %c0_1 = arith.constant 0 : index
    %c0_2 = arith.constant 0 : index
    %1 = vector.load %arg3[%c0_1, %c0_2] : memref<4x1xf32, #tpu.memory_space<vmem>>, vector<4x1xf32>
    %c0_3 = arith.constant 0 : index
    %c0_4 = arith.constant 0 : index
    %2 = vector.load %arg5[%c0_3, %c0_4] : memref<4x1xf32, #tpu.memory_space<vmem>>, vector<4x1xf32>
    %c0_5 = arith.constant 0 : index
    %c0_6 = arith.constant 0 : index
    %c0_7 = arith.constant 0 : index
    %3 = vector.load %arg4[%c0_5, %c0_6, %c0_7] : memref<9x4x1xf32, #tpu.memory_space<vmem>>, vector<9x4x1xf32>
    %c0_8 = arith.constant 0 : index
    %c0_9 = arith.constant 0 : index
    %4 = vector.load %arg6[%c0_8, %c0_9] : memref<9x256xf32, #tpu.memory_space<vmem>>, vector<9x256xf32>
    %5 = vector.extract_strided_slice %4 {offsets = [0, 0], sizes = [1, 256], strides = [1, 1]} : vector<9x256xf32> to vector<1x256xf32>
    %6 = vector.extract_strided_slice %3 {offsets = [0, 0, 0], sizes = [1, 4, 1], strides = [1, 1, 1]} : vector<9x4x1xf32> to vector<1x4x1xf32>
    %7 = vector.shape_cast %6 : vector<1x4x1xf32> to vector<4x1xf32>
    %8 = vector.extract_strided_slice %4 {offsets = [1, 0], sizes = [1, 256], strides = [1, 1]} : vector<9x256xf32> to vector<1x256xf32>
    %9 = vector.extract_strided_slice %3 {offsets = [1, 0, 0], sizes = [1, 4, 1], strides = [1, 1, 1]} : vector<9x4x1xf32> to vector<1x4x1xf32>
    %10 = vector.shape_cast %9 : vector<1x4x1xf32> to vector<4x1xf32>
    %11 = vector.extract_strided_slice %4 {offsets = [2, 0], sizes = [1, 256], strides = [1, 1]} : vector<9x256xf32> to vector<1x256xf32>
    %12 = vector.extract_strided_slice %3 {offsets = [2, 0, 0], sizes = [1, 4, 1], strides = [1, 1, 1]} : vector<9x4x1xf32> to vector<1x4x1xf32>
    %13 = vector.shape_cast %12 : vector<1x4x1xf32> to vector<4x1xf32>
    %14 = vector.extract_strided_slice %4 {offsets = [3, 0], sizes = [1, 256], strides = [1, 1]} : vector<9x256xf32> to vector<1x256xf32>
    %15 = vector.extract_strided_slice %3 {offsets = [3, 0, 0], sizes = [1, 4, 1], strides = [1, 1, 1]} : vector<9x4x1xf32> to vector<1x4x1xf32>
    %16 = vector.shape_cast %15 : vector<1x4x1xf32> to vector<4x1xf32>
    %17 = vector.extract_strided_slice %3 {offsets = [4, 0, 0], sizes = [1, 4, 1], strides = [1, 1, 1]} : vector<9x4x1xf32> to vector<1x4x1xf32>
    %18 = vector.shape_cast %17 : vector<1x4x1xf32> to vector<4x1xf32>
    %19 = vector.extract_strided_slice %4 {offsets = [5, 0], sizes = [1, 256], strides = [1, 1]} : vector<9x256xf32> to vector<1x256xf32>
    %20 = vector.extract_strided_slice %3 {offsets = [5, 0, 0], sizes = [1, 4, 1], strides = [1, 1, 1]} : vector<9x4x1xf32> to vector<1x4x1xf32>
    %21 = vector.shape_cast %20 : vector<1x4x1xf32> to vector<4x1xf32>
    %22 = vector.extract_strided_slice %4 {offsets = [6, 0], sizes = [1, 256], strides = [1, 1]} : vector<9x256xf32> to vector<1x256xf32>
    %23 = vector.extract_strided_slice %3 {offsets = [6, 0, 0], sizes = [1, 4, 1], strides = [1, 1, 1]} : vector<9x4x1xf32> to vector<1x4x1xf32>
    %24 = vector.shape_cast %23 : vector<1x4x1xf32> to vector<4x1xf32>
    %25 = vector.extract_strided_slice %4 {offsets = [7, 0], sizes = [1, 256], strides = [1, 1]} : vector<9x256xf32> to vector<1x256xf32>
    %26 = vector.extract_strided_slice %3 {offsets = [7, 0, 0], sizes = [1, 4, 1], strides = [1, 1, 1]} : vector<9x4x1xf32> to vector<1x4x1xf32>
    %27 = vector.shape_cast %26 : vector<1x4x1xf32> to vector<4x1xf32>
    %28 = vector.extract_strided_slice %4 {offsets = [8, 0], sizes = [1, 256], strides = [1, 1]} : vector<9x256xf32> to vector<1x256xf32>
    %29 = vector.extract_strided_slice %3 {offsets = [8, 0, 0], sizes = [1, 4, 1], strides = [1, 1, 1]} : vector<9x4x1xf32> to vector<1x4x1xf32>
    %30 = vector.shape_cast %29 : vector<1x4x1xf32> to vector<4x1xf32>
    %c0_10 = arith.constant 0 : index
    %c0_11 = arith.constant 0 : index
    %c0_12 = arith.constant 0 : index
    %31 = vector.load %arg1[%c0_10, %c0_11, %c0_12] : memref<1x4x256xf32, #tpu.memory_space<vmem>>, vector<1x4x256xf32>
    %32 = vector.shape_cast %31 : vector<1x4x256xf32> to vector<4x256xf32>
    %cst = arith.constant dense<0.000000e+00> : vector<4x256xf32>
    %33 = tpu.matmul %0, %32, %cst {dimension_numbers = #tpu.dot_dimension_numbers<[1], [0], [0], [1], [0, 0, 1, 1], [], []>} : vector<4x4xf32>, vector<4x256xf32>, vector<4x256xf32> -> vector<4x256xf32>
    %34 = vector.broadcast %1 : vector<4x1xf32> to vector<4x256xf32>
    %35 = arith.addf %33, %34 : vector<4x256xf32>
    %cst_13 = arith.constant 0.000000e+00 : f32
    %36 = vector.broadcast %cst_13 : f32 to vector<4x256xf32>
    %37 = arith.maximumf %35, %36 : vector<4x256xf32>
    %c0_14 = arith.constant 0 : index
    %c0_15 = arith.constant 0 : index
    %c0_16 = arith.constant 0 : index
    %38 = vector.load %arg7[%c0_14, %c0_15, %c0_16] : memref<1x4x256xf32, #tpu.memory_space<vmem>>, vector<1x4x256xf32>
    %39 = vector.shape_cast %38 : vector<1x4x256xf32> to vector<4x256xf32>
    %40 = vector.shape_cast %37 : vector<4x256xf32> to vector<1x4x256xf32>
    tpu.vector_store %arg7[%c0_14, %c0_15, %c0_16], %40 {strides = array<i32>} : memref<1x4x256xf32, #tpu.memory_space<vmem>>, vector<1x4x256xf32>,
    %cst_17 = arith.constant 0.000000e+00 : f32
    %41 = vector.broadcast %cst_17 : f32 to vector<4x256xf32>
    %c17_i32 = arith.constant 17 : i32
    %42 = tpu.dynamic_rotate %37 by %c17_i32 dim 1 : vector<4x256xf32>, i32 -> vector<4x256xf32>
    %43 = vector.broadcast %5 : vector<1x256xf32> to vector<4x256xf32>
    %44 = arith.mulf %42, %43 : vector<4x256xf32>
    %45 = vector.broadcast %7 : vector<4x1xf32> to vector<4x256xf32>
    %46 = arith.mulf %44, %45 : vector<4x256xf32>
    %47 = arith.addf %41, %46 : vector<4x256xf32>
    %c16_i32 = arith.constant 16 : i32
    %48 = tpu.dynamic_rotate %37 by %c16_i32 dim 1 : vector<4x256xf32>, i32 -> vector<4x256xf32>
    %49 = vector.broadcast %8 : vector<1x256xf32> to vector<4x256xf32>
    %50 = arith.mulf %48, %49 : vector<4x256xf32>
    %51 = vector.broadcast %10 : vector<4x1xf32> to vector<4x256xf32>
    %52 = arith.mulf %50, %51 : vector<4x256xf32>
    %53 = arith.addf %47, %52 : vector<4x256xf32>
    %c15_i32 = arith.constant 15 : i32
    %54 = tpu.dynamic_rotate %37 by %c15_i32 dim 1 : vector<4x256xf32>, i32 -> vector<4x256xf32>
    %55 = vector.broadcast %11 : vector<1x256xf32> to vector<4x256xf32>
    %56 = arith.mulf %54, %55 : vector<4x256xf32>
    %57 = vector.broadcast %13 : vector<4x1xf32> to vector<4x256xf32>
    %58 = arith.mulf %56, %57 : vector<4x256xf32>
    %59 = arith.addf %53, %58 : vector<4x256xf32>
    %c1_i32 = arith.constant 1 : i32
    %60 = tpu.dynamic_rotate %37 by %c1_i32 dim 1 : vector<4x256xf32>, i32 -> vector<4x256xf32>
    %61 = vector.broadcast %14 : vector<1x256xf32> to vector<4x256xf32>
    %62 = arith.mulf %60, %61 : vector<4x256xf32>
    %63 = vector.broadcast %16 : vector<4x1xf32> to vector<4x256xf32>
    %64 = arith.mulf %62, %63 : vector<4x256xf32>
    %65 = arith.addf %59, %64 : vector<4x256xf32>
    %66 = vector.broadcast %18 : vector<4x1xf32> to vector<4x256xf32>
    %67 = arith.mulf %37, %66 : vector<4x256xf32>
    %68 = arith.addf %65, %67 : vector<4x256xf32>
    %c255_i32 = arith.constant 255 : i32
    %69 = tpu.dynamic_rotate %37 by %c255_i32 dim 1 : vector<4x256xf32>, i32 -> vector<4x256xf32>
    %70 = vector.broadcast %19 : vector<1x256xf32> to vector<4x256xf32>
    %71 = arith.mulf %69, %70 : vector<4x256xf32>
    %72 = vector.broadcast %21 : vector<4x1xf32> to vector<4x256xf32>
    %73 = arith.mulf %71, %72 : vector<4x256xf32>
    %74 = arith.addf %68, %73 : vector<4x256xf32>
    %c241_i32 = arith.constant 241 : i32
    %75 = tpu.dynamic_rotate %37 by %c241_i32 dim 1 : vector<4x256xf32>, i32 -> vector<4x256xf32>
    %76 = vector.broadcast %22 : vector<1x256xf32> to vector<4x256xf32>
    %77 = arith.mulf %75, %76 : vector<4x256xf32>
    %78 = vector.broadcast %24 : vector<4x1xf32> to vector<4x256xf32>
    %79 = arith.mulf %77, %78 : vector<4x256xf32>
    %80 = arith.addf %74, %79 : vector<4x256xf32>
    %c240_i32 = arith.constant 240 : i32
    %81 = tpu.dynamic_rotate %37 by %c240_i32 dim 1 : vector<4x256xf32>, i32 -> vector<4x256xf32>
    %82 = vector.broadcast %25 : vector<1x256xf32> to vector<4x256xf32>
    %83 = arith.mulf %81, %82 : vector<4x256xf32>
    %84 = vector.broadcast %27 : vector<4x1xf32> to vector<4x256xf32>
    %85 = arith.mulf %83, %84 : vector<4x256xf32>
    %86 = arith.addf %80, %85 : vector<4x256xf32>
    %c239_i32 = arith.constant 239 : i32
    %87 = tpu.dynamic_rotate %37 by %c239_i32 dim 1 : vector<4x256xf32>, i32 -> vector<4x256xf32>
    %88 = vector.broadcast %28 : vector<1x256xf32> to vector<4x256xf32>
    %89 = arith.mulf %87, %88 : vector<4x256xf32>
    %90 = vector.broadcast %30 : vector<4x1xf32> to vector<4x256xf32>
    %91 = arith.mulf %89, %90 : vector<4x256xf32>
    %92 = arith.addf %86, %91 : vector<4x256xf32>
    %93 = vector.broadcast %2 : vector<4x1xf32> to vector<4x256xf32>
    %94 = arith.addf %92, %93 : vector<4x256xf32>
    %cst_18 = arith.constant 0.000000e+00 : f32
    %95 = vector.broadcast %cst_18 : f32 to vector<4x256xf32>
    %96 = arith.maximumf %94, %95 : vector<4x256xf32>
    %c0_19 = arith.constant 0 : index
    %c0_20 = arith.constant 0 : index
    %c0_21 = arith.constant 0 : index
    %97 = vector.load %arg8[%c0_19, %c0_20, %c0_21] : memref<1x4x256xf32, #tpu.memory_space<vmem>>, vector<1x4x256xf32>
    %98 = vector.shape_cast %97 : vector<1x4x256xf32> to vector<4x256xf32>
    %99 = vector.shape_cast %96 : vector<4x256xf32> to vector<1x4x256xf32>
    tpu.vector_store %arg8[%c0_19, %c0_20, %c0_21], %99 {strides = array<i32>} : memref<1x4x256xf32, #tpu.memory_space<vmem>>, vector<1x4x256xf32>,
    return
  }
  func.func @transform_0(%arg0: i32) -> (i32, i32, i32) {
    %c0_i32 = arith.constant 0 : i32
    %c0_i32_0 = arith.constant 0 : i32
    %c0_i32_1 = arith.constant 0 : i32
    return %arg0, %c0_i32, %c0_i32_0 : i32, i32, i32
  }
  func.func @transform_1(%arg0: i32) -> (i32, i32) {
    %c0_i32 = arith.constant 0 : i32
    %c0_i32_0 = arith.constant 0 : i32
    %c0_i32_1 = arith.constant 0 : i32
    return %c0_i32, %c0_i32_0 : i32, i32
  }
  func.func @transform_2(%arg0: i32) -> (i32, i32) {
    %c0_i32 = arith.constant 0 : i32
    %c0_i32_0 = arith.constant 0 : i32
    %c0_i32_1 = arith.constant 0 : i32
    return %c0_i32, %c0_i32_0 : i32, i32
  }
  func.func @transform_3(%arg0: i32) -> (i32, i32, i32) {
    %c0_i32 = arith.constant 0 : i32
    %c0_i32_0 = arith.constant 0 : i32
    %c0_i32_1 = arith.constant 0 : i32
    %c0_i32_2 = arith.constant 0 : i32
    return %c0_i32, %c0_i32_0, %c0_i32_1 : i32, i32, i32
  }
  func.func @transform_4(%arg0: i32) -> (i32, i32) {
    %c0_i32 = arith.constant 0 : i32
    %c0_i32_0 = arith.constant 0 : i32
    %c0_i32_1 = arith.constant 0 : i32
    return %c0_i32, %c0_i32_0 : i32, i32
  }
  func.func @transform_5(%arg0: i32) -> (i32, i32) {
    %c0_i32 = arith.constant 0 : i32
    %c0_i32_0 = arith.constant 0 : i32
    %c0_i32_1 = arith.constant 0 : i32
    return %c0_i32, %c0_i32_0 : i32, i32
  }
  func.func @transform_6(%arg0: i32) -> (i32, i32, i32) {
    %c0_i32 = arith.constant 0 : i32
    %c0_i32_0 = arith.constant 0 : i32
    %c0_i32_1 = arith.constant 0 : i32
    return %arg0, %c0_i32, %c0_i32_0 : i32, i32, i32
  }
  func.func @transform_7(%arg0: i32) -> (i32, i32, i32) {
    %c0_i32 = arith.constant 0 : i32
    %c0_i32_0 = arith.constant 0 : i32
    %c0_i32_1 = arith.constant 0 : i32
    return %arg0, %c0_i32, %c0_i32_0 : i32, i32, i32
  }
}

</mosaic_0001>

<llo_original>
// kernel: tpu_custom_call.1
$region0: #{tpu_custom_call.1}
  #allocation0 [shape = 'u32[]', space=smem, size = 0x4, offset = 0x4, fixed_abs, tag = 'smem constant byte address 0x4 - core index']
  #allocation1 [shape = 'u32[144,128]{1,0:T(1,128)}', space=vmem, size = 0x12000, scoped, tag = 'internal scratch']
  %s0 = inlined_call_operand.vmem [shape: f32[2,4,256], index: 0, kind: input, shape index: {}]
  %s1 = inlined_call_operand.vmem [shape: f32[4,4], index: 1, kind: input, shape index: {}]
  %s2 = inlined_call_operand.vmem [shape: f32[4,1], index: 2, kind: input, shape index: {}]
  %s3 = inlined_call_operand.vmem [shape: f32[9,4,1], index: 3, kind: input, shape index: {}]
  %s4 = inlined_call_operand.vmem [shape: f32[4,1], index: 4, kind: input, shape index: {}]
  %s5 = inlined_call_operand.vmem [shape: f32[9,256], index: 5, kind: input, shape index: {}]
  %s6 = inlined_call_operand.hbm [shape: f32[2,4,256], index: 6, kind: output, shape index: {0}]
  %s7 = inlined_call_operand.hbm [shape: f32[2,4,256], index: 7, kind: output, shape index: {1}]
  %8 = xla_tuple %s6, %s7
  %s9 = sld [smem:[#allocation0]]
  $region65: #{tpu_custom_call.1} parent=0
    _
  %s11 = ssub.s32 1, %s9
  %s12 = scalar_select 0, %s11, %s9
  $region1: #{tpu_custom_call.1} parent=0
    #allocation2 [shape = 'u8[8192]{0}', space=vmem, size = 0x2000, scoped, tag = 'output window, operand 0']
    #allocation3 [shape = 's32[2]{0}', space=sflag, size = 0x8, scoped, tag = 'scoped memory for tpu_custom_call.1']
    #allocation4 [shape = 'u8[8192]{0}', space=vmem, size = 0x2000, scoped, tag = 'output window, operand 1']
    #allocation5 [shape = 's32[2]{0}', space=sflag, size = 0x8, scoped, tag = 'scoped memory for tpu_custom_call.1']
    %13 = vsyncpa [#allocation3], 0
    %s14 = scalar_lea.sflag [#allocation3], 1
    %15 = vsyncpa %s14, 0
    %16 = vsyncpa [#allocation5], 0
    %s17 = scalar_lea.sflag [#allocation5], 1
    %18 = vsyncpa %s17, 0
    loop: start=0, step=1, limit=4
    $region2: #{tpu_custom_call.1} parent=1 // loop_pre_header
      _
    $region3: #{tpu_custom_call.1} parent=1 // loop_header
      %s20 = sphi 0, %s24
      %p21 = scmp.ge.s32.totalorder %s20, 4
      %s30 = sphi 0, %s32
      %s33 = sphi 0, %s30
      %s34 = sphi 0, %s33
      %s50 = sphi 0, %s34
      %s54 = sphi 0, %s54
      %s56 = sphi 0, %s54
      %s57 = sphi 0, %s56
      %s71 = sphi 0, %s57
      %s75 = sphi 0, %s75
      %s77 = sphi 0, %s75
      %s78 = sphi 0, %s77
      %s92 = sphi 0, %s78
      %s96 = sphi 0, %s96
      %s98 = sphi 0, %s96
      %s99 = sphi 0, %s98
      %s113 = sphi 0, %s99
      %s117 = sphi 0, %s117
      %s119 = sphi 0, %s117
      %s120 = sphi 0, %s119
      %s134 = sphi 0, %s120
      %s138 = sphi 0, %s138
      %s140 = sphi 0, %s138
      %s141 = sphi 0, %s140
      %s155 = sphi 0, %s141
      %s161 = sphi 0, %s163
      %s164 = sphi 0, %s161
      %s165 = sphi 0, %s164
      %s181 = sphi 0, %s165
      %s187 = sphi 0, %s189
      %s190 = sphi 0, %s187
      %s191 = sphi 0, %s190
      %s207 = sphi 0, %s191
    $region4: #{tpu_custom_call.1} parent=1 // loop_header_branch
      %23 = sbr.rel (%p21) target = $region8
    $region5: #{tpu_custom_call.1} parent=1 // loop_body
      %s25 = ssub.s32 %s20, 1
      %s26 = ssub.s32 %s20, 2
      %s27 = sadd.s32 %s20, 1
      %s28 = ssub.s32 %s20, %s27
      %p29 = scmp.eq.s32.totalorder %s28, 0
      %s31 = sadd.s32 %s30, 1
      %s32 = scalar_select %p29, %s30, %s31
      %p35 = pneg %p29
      %p36 = scmp.eq.s32.totalorder %s20, 1
      %p37 = por %p35, %p36
      %p38 = scmp.ne.s32.totalorder %s30, %s33
      %p39 = scmp.eq.s32.totalorder %s20, 0
      %p40 = por %p38, %p39
      %p41 = scmp.ne.s32.totalorder %s30, %s33
      %p42 = scmp.eq.s32.totalorder %s25, 1
      %p43 = por %p41, %p42
      %p44 = scmp.ne.s32.totalorder %s33, %s34
      %p45 = scmp.eq.s32.totalorder %s25, 0
      %p46 = por %p44, %p45
      %p47 = scmp.ne.s32.totalorder %s33, %s34
      %p48 = scmp.eq.s32.totalorder %s26, 1
      %p49 = por %p47, %p48
      %p51 = scmp.ne.s32.totalorder %s34, %s50
      %p52 = scmp.eq.s32.totalorder %s26, 0
      %p53 = por %p51, %p52
      %s55 = sadd.s32 %s54, 1
      %p58 = scmp.eq.s32.totalorder %s20, 1
      %p59 = scmp.ne.s32.totalorder %s54, %s56
      %p60 = scmp.eq.s32.totalorder %s20, 0
      %p61 = por %p59, %p60
      %p62 = scmp.ne.s32.totalorder %s54, %s56
      %p63 = scmp.eq.s32.totalorder %s25, 1
      %p64 = por %p62, %p63
      %p65 = scmp.ne.s32.totalorder %s56, %s57
      %p66 = scmp.eq.s32.totalorder %s25, 0
      %p67 = por %p65, %p66
      %p68 = scmp.ne.s32.totalorder %s56, %s57
      %p69 = scmp.eq.s32.totalorder %s26, 1
      %p70 = por %p68, %p69
      %p72 = scmp.ne.s32.totalorder %s57, %s71
      %p73 = scmp.eq.s32.totalorder %s26, 0
      %p74 = por %p72, %p73
      %s76 = sadd.s32 %s75, 1
      %p79 = scmp.eq.s32.totalorder %s20, 1
      %p80 = scmp.ne.s32.totalorder %s75, %s77
      %p81 = scmp.eq.s32.totalorder %s20, 0
      %p82 = por %p80, %p81
      %p83 = scmp.ne.s32.totalorder %s75, %s77
      %p84 = scmp.eq.s32.totalorder %s25, 1
      %p85 = por %p83, %p84
      %p86 = scmp.ne.s32.totalorder %s77, %s78
      %p87 = scmp.eq.s32.totalorder %s25, 0
      %p88 = por %p86, %p87
      %p89 = scmp.ne.s32.totalorder %s77, %s78
      %p90 = scmp.eq.s32.totalorder %s26, 1
      %p91 = por %p89, %p90
      %p93 = scmp.ne.s32.totalorder %s78, %s92
      %p94 = scmp.eq.s32.totalorder %s26, 0
      %p95 = por %p93, %p94
      %s97 = sadd.s32 %s96, 1
      %p100 = scmp.eq.s32.totalorder %s20, 1
      %p101 = scmp.ne.s32.totalorder %s96, %s98
      %p102 = scmp.eq.s32.totalorder %s20, 0
      %p103 = por %p101, %p102
      %p104 = scmp.ne.s32.totalorder %s96, %s98
      %p105 = scmp.eq.s32.totalorder %s25, 1
      %p106 = por %p104, %p105
      %p107 = scmp.ne.s32.totalorder %s98, %s99
      %p108 = scmp.eq.s32.totalorder %s25, 0
      %p109 = por %p107, %p108
      %p110 = scmp.ne.s32.totalorder %s98, %s99
      %p111 = scmp.eq.s32.totalorder %s26, 1
      %p112 = por %p110, %p111
      %p114 = scmp.ne.s32.totalorder %s99, %s113
      %p115 = scmp.eq.s32.totalorder %s26, 0
      %p116 = por %p114, %p115
      %s118 = sadd.s32 %s117, 1
      %p121 = scmp.eq.s32.totalorder %s20, 1
      %p122 = scmp.ne.s32.totalorder %s117, %s119
      %p123 = scmp.eq.s32.totalorder %s20, 0
      %p124 = por %p122, %p123
      %p125 = scmp.ne.s32.totalorder %s117, %s119
      %p126 = scmp.eq.s32.totalorder %s25, 1
      %p127 = por %p125, %p126
      %p128 = scmp.ne.s32.totalorder %s119, %s120
      %p129 = scmp.eq.s32.totalorder %s25, 0
      %p130 = por %p128, %p129
      %p131 = scmp.ne.s32.totalorder %s119, %s120
      %p132 = scmp.eq.s32.totalorder %s26, 1
      %p133 = por %p131, %p132
      %p135 = scmp.ne.s32.totalorder %s120, %s134
      %p136 = scmp.eq.s32.totalorder %s26, 0
      %p137 = por %p135, %p136
      %s139 = sadd.s32 %s138, 1
      %p142 = scmp.eq.s32.totalorder %s20, 1
      %p143 = scmp.ne.s32.totalorder %s138, %s140
      %p144 = scmp.eq.s32.totalorder %s20, 0
      %p145 = por %p143, %p144
      %p146 = scmp.ne.s32.totalorder %s138, %s140
      %p147 = scmp.eq.s32.totalorder %s25, 1
      %p148 = por %p146, %p147
      %p149 = scmp.ne.s32.totalorder %s140, %s141
      %p150 = scmp.eq.s32.totalorder %s25, 0
      %p151 = por %p149, %p150
      %p152 = scmp.ne.s32.totalorder %s140, %s141
      %p153 = scmp.eq.s32.totalorder %s26, 1
      %p154 = por %p152, %p153
      %p156 = scmp.ne.s32.totalorder %s141, %s155
      %p157 = scmp.eq.s32.totalorder %s26, 0
      %p158 = por %p156, %p157
      %s159 = ssub.s32 %s20, %s27
      %p160 = scmp.eq.s32.totalorder %s159, 0
      %s162 = sadd.s32 %s161, 1
      %s163 = scalar_select %p160, %s161, %s162
      %p166 = pneg %p160
      %p167 = scmp.eq.s32.totalorder %s20, 1
      %p168 = por %p166, %p167
      %p169 = scmp.ne.s32.totalorder %s161, %s164
      %p170 = scmp.eq.s32.totalorder %s20, 0
      %p171 = por %p169, %p170
      %p172 = scmp.ne.s32.totalorder %s161, %s164
      %p173 = scmp.eq.s32.totalorder %s25, 1
      %p174 = por %p172, %p173
      %p175 = scmp.ne.s32.totalorder %s164, %s165
      %p176 = scmp.eq.s32.totalorder %s25, 0
      %p177 = por %p175, %p176
      %p178 = scmp.ne.s32.totalorder %s164, %s165
      %p179 = scmp.eq.s32.totalorder %s26, 1
      %p180 = por %p178, %p179
      %p182 = scmp.ne.s32.totalorder %s165, %s181
      %p183 = scmp.eq.s32.totalorder %s26, 0
      %p184 = por %p182, %p183
      %s185 = ssub.s32 %s20, %s27
      %p186 = scmp.eq.s32.totalorder %s185, 0
      %s188 = sadd.s32 %s187, 1
      %s189 = scalar_select %p186, %s187, %s188
      %p192 = pneg %p186
      %p193 = scmp.eq.s32.totalorder %s20, 1
      %p194 = por %p192, %p193
      %p195 = scmp.ne.s32.totalorder %s187, %s190
      %p196 = scmp.eq.s32.totalorder %s20, 0
      %p197 = por %p195, %p196
      %p198 = scmp.ne.s32.totalorder %s187, %s190
      %p199 = scmp.eq.s32.totalorder %s25, 1
      %p200 = por %p198, %p199
      %p201 = scmp.ne.s32.totalorder %s190, %s191
      %p202 = scmp.eq.s32.totalorder %s25, 0
      %p203 = por %p201, %p202
      %p204 = scmp.ne.s32.totalorder %s190, %s191
      %p205 = scmp.eq.s32.totalorder %s26, 1
      %p206 = por %p204, %p205
      %p208 = scmp.ne.s32.totalorder %s191, %s207
      %p209 = scmp.eq.s32.totalorder %s26, 0
      %p210 = por %p208, %p209
      %p211 = scmp.le.s32.totalorder 1, %s20
      %p212 = scmp.lt.s32.totalorder %s20, 3
      %p213 = pnand %p211, %p212
      %p214 = pneg %p213
      // Predicated region
      $region9: #{tpu_custom_call.1} parent=5 // pred_check
        _
      $region10: #{tpu_custom_call.1} parent=5 // pred_check_branch
        %216 = sbr.rel (%p213) target = $region12
      $region11: #{tpu_custom_call.1} parent=5 // pred_region
        %s217 = ssub.s32 %s20, 1
        // Predicated region
        $region13: #{tpu_custom_call.1} parent=11 // pred_check
          %p218 = pneg %p67
        $region14: #{tpu_custom_call.1} parent=11 // pred_check_branch
          %220 = sbr.rel (%p218) target = $region16
        $region15: #{tpu_custom_call.1} parent=11 // pred_region
          _
        $region16: #{tpu_custom_call.1} parent=11 // pred_fallthru
          _
        // Predicated region
        $region17: #{tpu_custom_call.1} parent=11 // pred_check
          %p221 = pneg %p88
        $region18: #{tpu_custom_call.1} parent=11 // pred_check_branch
          %223 = sbr.rel (%p221) target = $region20
        $region19: #{tpu_custom_call.1} parent=11 // pred_region
          _
        $region20: #{tpu_custom_call.1} parent=11 // pred_fallthru
          _
        // Predicated region
        $region21: #{tpu_custom_call.1} parent=11 // pred_check
          %p224 = pneg %p109
        $region22: #{tpu_custom_call.1} parent=11 // pred_check_branch
          %226 = sbr.rel (%p224) target = $region24
        $region23: #{tpu_custom_call.1} parent=11 // pred_region
          _
        $region24: #{tpu_custom_call.1} parent=11 // pred_fallthru
          _
        // Predicated region
        $region25: #{tpu_custom_call.1} parent=11 // pred_check
          %p227 = pneg %p130
        $region26: #{tpu_custom_call.1} parent=11 // pred_check_branch
          %229 = sbr.rel (%p227) target = $region28
        $region27: #{tpu_custom_call.1} parent=11 // pred_region
          _
        $region28: #{tpu_custom_call.1} parent=11 // pred_fallthru
          _
        // Predicated region
        $region29: #{tpu_custom_call.1} parent=11 // pred_check
          %p230 = pneg %p151
        $region30: #{tpu_custom_call.1} parent=11 // pred_check_branch
          %232 = sbr.rel (%p230) target = $region32
        $region31: #{tpu_custom_call.1} parent=11 // pred_region
          _
        $region32: #{tpu_custom_call.1} parent=11 // pred_fallthru
          _
      $region12: #{tpu_custom_call.1} parent=5 // pred_fallthru
        _
      %p233 = scmp.lt.s32.totalorder %s20, 2
      // Predicated region
      $region33: #{tpu_custom_call.1} parent=5 // pred_check
        %p234 = pneg %p233
      $region34: #{tpu_custom_call.1} parent=5 // pred_check_branch
        %236 = sbr.rel (%p234) target = $region36
      $region35: #{tpu_custom_call.1} parent=5 // pred_region
        // Predicated region
        $region37: #{tpu_custom_call.1} parent=35 // pred_check
          %p237 = pneg %p40
        $region38: #{tpu_custom_call.1} parent=35 // pred_check_branch
          %239 = sbr.rel (%p237) target = $region40
        $region39: #{tpu_custom_call.1} parent=35 // pred_region
          %p240 = scmp.lt.s32.totalorder %s20, 1
          %s241 = scalar_select %p240, %s20, 1
          %s242 = smul.addr %s241, 2
          %s243 = smul.addr %s242, 4
          %s244 = scalar_lea.vmem %s0, %s243
        $region40: #{tpu_custom_call.1} parent=35 // pred_fallthru
          _
      $region36: #{tpu_custom_call.1} parent=5 // pred_fallthru
        _
      %p245 = scmp.le.s32.totalorder 1, %s20
      %p246 = scmp.lt.s32.totalorder %s20, 3
      %p247 = pnand %p245, %p246
      %p248 = pneg %p247
      // Predicated region
      $region41: #{tpu_custom_call.1} parent=5 // pred_check
        _
      $region42: #{tpu_custom_call.1} parent=5 // pred_check_branch
        %250 = sbr.rel (%p247) target = $region44
      $region43: #{tpu_custom_call.1} parent=5 // pred_region
        %s251 = ssub.s32 %s20, 1
        %p252 = scmp.lt.s32.totalorder %s25, 1
        %s253 = scalar_select %p252, %s25, 1
        %s254 = smul.addr %s253, 2
        %s255 = smul.addr %s254, 4
        %s256 = scalar_lea.vmem %s0, %s255
        %p257 = pneg %p46
        %p258 = pneg %p43
        %p259 = pneg %p67
        %p260 = pneg %p64
        %p261 = pneg %p88
        %p262 = pneg %p85
        %p263 = pneg %p109
        %p264 = pneg %p106
        %p265 = pneg %p130
        %p266 = pneg %p127
        %p267 = pneg %p151
        %p268 = pneg %p148
        %p269 = pneg %p177
        %p270 = pneg %p174
        %s271 = sand.u32 %s164, 1
        %s272 = scalar_lea.sflag [#allocation3], %s271
        %s273 = sand.u32 %s164, 1
        %s274 = smul.addr %s273, 8
        %s275 = scalar_lea.vmem [#allocation2], %s274
        %p276 = pneg %p203
        %p277 = pneg %p200
        %s278 = sand.u32 %s190, 1
        %s279 = scalar_lea.sflag [#allocation5], %s278
        %s280 = sand.u32 %s190, 1
        %s281 = smul.addr %s280, 8
        %s282 = scalar_lea.vmem [#allocation4], %s281
        %p283 = scmp.lt.s32.totalorder %s25, 1
        %s284 = scalar_select %p283, %s25, 1
        %s285 = smul.addr %s284, 2
        %s286 = smul.addr %s285, 4
        %s287 = scalar_lea.vmem %s0, %s286
        %v288 = vld [vmem:[%s1] sm:$0xf]
        %v289 = vld [vmem:[%s2] sm:$0xf]
        %v290 = vld [vmem:[%s4] sm:$0xf]
        %v291 = vld [vmem:[%s3] sm:$0xf]
        %v292 = vld [vmem:[%s3 + $0x4] sm:$0xf]
        %v293 = vld [vmem:[%s3 + $0x8] sm:$0xf]
        %v294 = vld [vmem:[%s3 + $0xc] sm:$0xf]
        %v295 = vld [vmem:[%s3 + $0x10] sm:$0xf]
        %v296 = vld [vmem:[%s3 + $0x14] sm:$0xf]
        %v297 = vld [vmem:[%s3 + $0x18] sm:$0xf]
        %v298 = vld [vmem:[%s3 + $0x1c] sm:$0xf]
        %v299 = vld [vmem:[%s3 + $0x20] sm:$0xf]
        %v300 = vld [vmem:[%s5] sm:$0xff]
        %v301 = vld [vmem:[%s5 + $0x8] sm:$0xff]
        %v302 = vld [vmem:[%s5 + $0x10] sm:$0x1]
        %v303 = vld [vmem:[%s5 + $0x18] sm:$0x1]
        %v304 = vld [vmem:[%s287] sm:$0xff]
        %306 = vset.pattern.permute.xlu0 0
        %307 = vperm.xlu0 %306, %v289
        %v308 = vpop.permute.xlu0 %307
        %v311 = vcombine.high %v304, %v304
        %vm312 = vcmask 31744
        %v314 = vsel %vm312, %v288, 0
        %vm316 = vcmask 1043456
        %v317 = vsel %vm316, %v304, 0
        %v319 = vsel %vm316, %v311, 0
        %321 = vmatprep.subr.mxu0 %v319
        %322 = vmatpush1.msra.mxu0 %v317
        %323 = vmatprep.subr.mxu0 0.0
        %324 = vmatpush1.msra.mxu0 0.0
        %325 = vmatprep.subr.mxu0 0.0
        %326 = vmatpush1.msra.mxu0 0.0
        %327 = vmatprep.subr.mxu0 0.0
        %328 = vmatpush1.msra.mxu0 0.0
        %329 = vmatprep.subr.mxu0 0.0
        %330 = vmatpush1.msra.mxu0 0.0
        %331 = vmatprep.subr.mxu0 0.0
        %332 = vmatpush1.msra.mxu0 0.0
        %333 = vmatprep.subr.mxu0 0.0
        %334 = vmatpush1.msra.mxu0 0.0
        %335 = vmatprep.subr.mxu0 0.0
        %336 = vmatpush1.msra.mxu0 0.0
        %337 = vmatprep.subr.mxu0 0.0
        %338 = vmatpush1.msra.mxu0 0.0
        %339 = vmatprep.subr.mxu0 0.0
        %340 = vmatpush1.msra.mxu0 0.0
        %341 = vmatprep.subr.mxu0 0.0
        %342 = vmatpush1.msra.mxu0 0.0
        %343 = vmatprep.subr.mxu0 0.0
        %344 = vmatpush1.msra.mxu0 0.0
        %345 = vmatprep.subr.mxu0 0.0
        %346 = vmatpush1.msra.mxu0 0.0
        %347 = vmatprep.subr.mxu0 0.0
        %348 = vmatpush1.msra.mxu0 0.0
        %349 = vmatprep.subr.mxu0 0.0
        %350 = vmatpush1.msra.mxu0 0.0
        %351 = vmatprep.subr.mxu0 0.0
        %352 = vmatpush1.msra.mxu0 0.0
        %353 = vmatprep.subr.mxu0 0.0
        %354 = vmatpush1.msra.mxu0 0.0
        %355 = vmatprep.subr.mxu0 0.0
        %356 = vmatpush1.msra.mxu0 0.0
        %357 = vmatprep.subr.mxu0 0.0
        %358 = vmatpush1.msra.mxu0 0.0
        %359 = vmatprep.subr.mxu0 0.0
        %360 = vmatpush1.msra.mxu0 0.0
        %361 = vmatprep.subr.mxu0 0.0
        %362 = vmatpush1.msra.mxu0 0.0
        %363 = vmatprep.subr.mxu0 0.0
        %364 = vmatpush1.msra.mxu0 0.0
        %365 = vmatprep.subr.mxu0 0.0
        %366 = vmatpush1.msra.mxu0 0.0
        %367 = vmatprep.subr.mxu0 0.0
        %368 = vmatpush1.msra.mxu0 0.0
        %369 = vmatprep.subr.mxu0 0.0
        %370 = vmatpush1.msra.mxu0 0.0
        %371 = vmatprep.subr.mxu0 0.0
        %372 = vmatpush1.msra.mxu0 0.0
        %373 = vmatprep.subr.mxu0 0.0
        %374 = vmatpush1.msra.mxu0 0.0
        %375 = vmatprep.subr.mxu0 0.0
        %376 = vmatpush1.msra.mxu0 0.0
        %377 = vmatprep.subr.mxu0 0.0
        %378 = vmatpush1.msra.mxu0 0.0
        %379 = vmatprep.subr.mxu0 0.0
        %380 = vmatpush1.msra.mxu0 0.0
        %381 = vmatprep.subr.mxu0 0.0
        %382 = vmatpush1.msra.mxu0 0.0
        %383 = vmatprep.subr.mxu0 0.0
        %384 = vmatpush1.msra.mxu0 0.0
        %385 = vmatprep.mubr.f32.mxu0 0.0
        %386 = vmatmul.mubr.f32.gmra.mrb[0].mxu0 %v314
        %v387 = vpop.f32.mrb[0].mxu0
        %v388 = vadd.f32 %v308, %v387
        %v389 = vpop.f32.mrb[0].mxu0
        %v390 = vadd.f32 %v308, %v389
        %391 = vdwg.mxu0
        %v392 = vmax.f32 %v388, 0.0
        %v393 = vmax.f32 %v390, 0.0
        %v396 = vcombine.low %v392, %v393
        %398 = vst [vmem:[%s275] sm:$0xff] %v396
        %399 = vrot.lane.b32.xlu0 %v392, 17
        %v400 = vpop.permute.xlu0 %399
        %401 = vrot.lane.b32.xlu0 %v393, 17
        %v402 = vpop.permute.xlu0 %401
        %v403 = vlaneseq
        %v404 = vand.u32 %v403, 127
        %vm405 = vcmp.lt.s32.totalorder %v404, 17
        %v406 = vsel %vm405, %v400, %v402
        %v407 = vsel %vm405, %v402, %v400
        %v408 = vlaneseq
        %v409 = vshrl.u32 %v408, 7
        %v410 = vsub.s32 0, %v409
        %v411 = vrot.slane %v300, %v410
        %v412 = vlaneseq
        %v413 = vshrl.u32 %v412, 7
        %v414 = vsub.s32 0, %v413
        %v415 = vrot.slane %v301, %v414
        %v416 = vmul.f32 %v407, %v411
        %v417 = vmul.f32 %v406, %v415
        %419 = vset.pattern.permute.xlu0 0
        %420 = vperm.xlu0 %419, %v291
        %v421 = vpop.permute.xlu0 %420
        %v423 = vmul.f32 %v416, %v421
        %v424 = vmul.f32 %v417, %v421
        %v425 = vadd.f32 %v423, 0.0
        %v426 = vadd.f32 %v424, 0.0
        %427 = vrot.lane.b32.xlu0 %v392, 16
        %v428 = vpop.permute.xlu0 %427
        %429 = vrot.lane.b32.xlu0 %v393, 16
        %v430 = vpop.permute.xlu0 %429
        %vm431 = vcmp.lt.s32.totalorder %v404, 16
        %v432 = vsel %vm431, %v428, %v430
        %v433 = vsel %vm431, %v430, %v428
        %v434 = vlaneseq
        %v435 = vshrl.u32 %v434, 7
        %v436 = vsub.s32 1, %v435
        %v437 = vrot.slane %v300, %v436
        %v438 = vlaneseq
        %v439 = vshrl.u32 %v438, 7
        %v440 = vsub.s32 1, %v439
        %v441 = vrot.slane %v301, %v440
        %v442 = vmul.f32 %v433, %v437
        %v443 = vmul.f32 %v432, %v441
        %445 = vset.pattern.permute.xlu0 0
        %446 = vperm.xlu0 %445, %v292
        %v447 = vpop.permute.xlu0 %446
        %v449 = vmul.f32 %v442, %v447
        %v450 = vmul.f32 %v443, %v447
        %v451 = vadd.f32 %v425, %v449
        %v452 = vadd.f32 %v426, %v450
        %453 = vrot.lane.b32.xlu0 %v392, 15
        %v454 = vpop.permute.xlu0 %453
        %455 = vrot.lane.b32.xlu0 %v393, 15
        %v456 = vpop.permute.xlu0 %455
        %vm457 = vcmp.lt.s32.totalorder %v404, 15
        %v458 = vsel %vm457, %v454, %v456
        %v459 = vsel %vm457, %v456, %v454
        %v460 = vlaneseq
        %v461 = vshrl.u32 %v460, 7
        %v462 = vsub.s32 2, %v461
        %v463 = vrot.slane %v300, %v462
        %v464 = vlaneseq
        %v465 = vshrl.u32 %v464, 7
        %v466 = vsub.s32 2, %v465
        %v467 = vrot.slane %v301, %v466
        %v468 = vmul.f32 %v459, %v463
        %v469 = vmul.f32 %v458, %v467
        %471 = vset.pattern.permute.xlu0 0
        %472 = vperm.xlu0 %471, %v293
        %v473 = vpop.permute.xlu0 %472
        %v475 = vmul.f32 %v468, %v473
        %v476 = vmul.f32 %v469, %v473
        %v477 = vadd.f32 %v451, %v475
        %v478 = vadd.f32 %v452, %v476
        %479 = vrot.lane.b32.xlu0 %v392, 1
        %v480 = vpop.permute.xlu0 %479
        %481 = vrot.lane.b32.xlu0 %v393, 1
        %v482 = vpop.permute.xlu0 %481
        %vm483 = vcmp.lt.s32.totalorder %v404, 1
        %v484 = vsel %vm483, %v480, %v482
        %v485 = vsel %vm483, %v482, %v480
        %v486 = vlaneseq
        %v487 = vshrl.u32 %v486, 7
        %v488 = vsub.s32 3, %v487
        %v489 = vrot.slane %v300, %v488
        %v490 = vlaneseq
        %v491 = vshrl.u32 %v490, 7
        %v492 = vsub.s32 3, %v491
        %v493 = vrot.slane %v301, %v492
        %v494 = vmul.f32 %v485, %v489
        %v495 = vmul.f32 %v484, %v493
        %497 = vset.pattern.permute.xlu0 0
        %498 = vperm.xlu0 %497, %v294
        %v499 = vpop.permute.xlu0 %498
        %v501 = vmul.f32 %v494, %v499
        %v502 = vmul.f32 %v495, %v499
        %v503 = vadd.f32 %v477, %v501
        %v504 = vadd.f32 %v478, %v502
        %506 = vset.pattern.permute.xlu0 0
        %507 = vperm.xlu0 %506, %v295
        %v508 = vpop.permute.xlu0 %507
        %v510 = vmul.f32 %v392, %v508
        %v511 = vmul.f32 %v393, %v508
        %v512 = vadd.f32 %v503, %v510
        %v513 = vadd.f32 %v504, %v511
        %514 = vrot.lane.b32.xlu0 %v392, 127
        %v515 = vpop.permute.xlu0 %514
        %516 = vrot.lane.b32.xlu0 %v393, 127
        %v517 = vpop.permute.xlu0 %516
        %vm518 = vcmp.lt.s32.totalorder %v404, 127
        %v519 = vsel %vm518, %v515, %v517
        %v520 = vsel %vm518, %v517, %v515
        %v521 = vlaneseq
        %v522 = vshrl.u32 %v521, 7
        %v523 = vsub.s32 5, %v522
        %v524 = vrot.slane %v300, %v523
        %v525 = vlaneseq
        %v526 = vshrl.u32 %v525, 7
        %v527 = vsub.s32 5, %v526
        %v528 = vrot.slane %v301, %v527
        %v529 = vmul.f32 %v519, %v524
        %v530 = vmul.f32 %v520, %v528
        %532 = vset.pattern.permute.xlu0 0
        %533 = vperm.xlu0 %532, %v296
        %v534 = vpop.permute.xlu0 %533
        %v536 = vmul.f32 %v529, %v534
        %v537 = vmul.f32 %v530, %v534
        %v538 = vadd.f32 %v512, %v536
        %v539 = vadd.f32 %v513, %v537
        %540 = vrot.lane.b32.xlu0 %v392, 113
        %v541 = vpop.permute.xlu0 %540
        %542 = vrot.lane.b32.xlu0 %v393, 113
        %v543 = vpop.permute.xlu0 %542
        %vm544 = vcmp.lt.s32.totalorder %v404, 113
        %v545 = vsel %vm544, %v541, %v543
        %v546 = vsel %vm544, %v543, %v541
        %v547 = vlaneseq
        %v548 = vshrl.u32 %v547, 7
        %v549 = vsub.s32 6, %v548
        %v550 = vrot.slane %v300, %v549
        %v551 = vlaneseq
        %v552 = vshrl.u32 %v551, 7
        %v553 = vsub.s32 6, %v552
        %v554 = vrot.slane %v301, %v553
        %v555 = vmul.f32 %v545, %v550
        %v556 = vmul.f32 %v546, %v554
        %558 = vset.pattern.permute.xlu0 0
        %559 = vperm.xlu0 %558, %v297
        %v560 = vpop.permute.xlu0 %559
        %v562 = vmul.f32 %v555, %v560
        %v563 = vmul.f32 %v556, %v560
        %v564 = vadd.f32 %v538, %v562
        %v565 = vadd.f32 %v539, %v563
        %566 = vrot.lane.b32.xlu0 %v392, 112
        %v567 = vpop.permute.xlu0 %566
        %568 = vrot.lane.b32.xlu0 %v393, 112
        %v569 = vpop.permute.xlu0 %568
        %vm570 = vcmp.lt.s32.totalorder %v404, 112
        %v571 = vsel %vm570, %v567, %v569
        %v572 = vsel %vm570, %v569, %v567
        %v573 = vlaneseq
        %v574 = vshrl.u32 %v573, 7
        %v575 = vsub.s32 7, %v574
        %v576 = vrot.slane %v300, %v575
        %v577 = vlaneseq
        %v578 = vshrl.u32 %v577, 7
        %v579 = vsub.s32 7, %v578
        %v580 = vrot.slane %v301, %v579
        %v581 = vmul.f32 %v571, %v576
        %v582 = vmul.f32 %v572, %v580
        %584 = vset.pattern.permute.xlu0 0
        %585 = vperm.xlu0 %584, %v298
        %v586 = vpop.permute.xlu0 %585
        %v588 = vmul.f32 %v581, %v586
        %v589 = vmul.f32 %v582, %v586
        %v590 = vadd.f32 %v564, %v588
        %v591 = vadd.f32 %v565, %v589
        %592 = vrot.lane.b32.xlu0 %v392, 111
        %v593 = vpop.permute.xlu0 %592
        %594 = vrot.lane.b32.xlu0 %v393, 111
        %v595 = vpop.permute.xlu0 %594
        %vm596 = vcmp.lt.s32.totalorder %v404, 111
        %v597 = vsel %vm596, %v593, %v595
        %v598 = vsel %vm596, %v595, %v593
        %v599 = vlaneseq
        %v600 = vshrl.u32 %v599, 7
        %v601 = vsub.s32 0, %v600
        %v602 = vrot.slane %v302, %v601
        %v603 = vlaneseq
        %v604 = vshrl.u32 %v603, 7
        %v605 = vsub.s32 0, %v604
        %v606 = vrot.slane %v303, %v605
        %v607 = vmul.f32 %v597, %v602
        %v608 = vmul.f32 %v598, %v606
        %610 = vset.pattern.permute.xlu0 0
        %611 = vperm.xlu0 %610, %v299
        %v612 = vpop.permute.xlu0 %611
        %v614 = vmul.f32 %v607, %v612
        %v615 = vmul.f32 %v608, %v612
        %v616 = vadd.f32 %v590, %v614
        %v617 = vadd.f32 %v591, %v615
        %619 = vset.pattern.permute.xlu0 0
        %620 = vperm.xlu0 %619, %v290
        %v621 = vpop.permute.xlu0 %620
        %v623 = vadd.f32 %v616, %v621
        %v624 = vadd.f32 %v617, %v621
        %v625 = vmax.f32 %v623, 0.0
        %v626 = vmax.f32 %v624, 0.0
        %v629 = vcombine.low %v625, %v626
        %631 = vst [vmem:[%s282] sm:$0xff] %v629
        %s632 = sand.u32 %s164, 1
        %s633 = scalar_lea.sflag [#allocation3], %s632
        %s634 = sand.u32 %s164, 1
        %s635 = smul.addr %s634, 8
        %s636 = scalar_lea.vmem [#allocation2], %s635
        %s637 = sand.u32 %s190, 1
        %s638 = scalar_lea.sflag [#allocation5], %s637
        %s639 = sand.u32 %s190, 1
        %s640 = smul.addr %s639, 8
        %s641 = scalar_lea.vmem [#allocation4], %s640
        // Predicated region
        $region45: #{tpu_custom_call.1} parent=43 // pred_check
          %p642 = pneg %p174
        $region46: #{tpu_custom_call.1} parent=43 // pred_check_branch
          %644 = sbr.rel (%p642) target = $region48
        $region47: #{tpu_custom_call.1} parent=43 // pred_region
          %s646 = ssub.s32 128, 128
          %647 = vsyncadd %s633, %s646
          %s648 = smul.addr %s25, 2
          %s649 = smul.addr %s648, 64
          %s650 = scalar_lea.hbm %s6, %s649
          %s652 = sshll.u32 %s636, 4
          %s653 = int_to_ptr.vmem [resolvable:$true] %s652
          %655 = dma.vmem_to_hbm [thread:$0]  %s653, 128, %s650, %s633
        $region48: #{tpu_custom_call.1} parent=43 // pred_fallthru
          _
        // Predicated region
        $region49: #{tpu_custom_call.1} parent=43 // pred_check
          %p656 = pneg %p200
        $region50: #{tpu_custom_call.1} parent=43 // pred_check_branch
          %658 = sbr.rel (%p656) target = $region52
        $region51: #{tpu_custom_call.1} parent=43 // pred_region
          %s660 = ssub.s32 128, 128
          %661 = vsyncadd %s638, %s660
          %s662 = smul.addr %s25, 2
          %s663 = smul.addr %s662, 64
          %s664 = scalar_lea.hbm %s7, %s663
          %s666 = sshll.u32 %s641, 4
          %s667 = int_to_ptr.vmem [resolvable:$true] %s666
          %669 = dma.vmem_to_hbm [thread:$0]  %s667, 128, %s664, %s638
        $region52: #{tpu_custom_call.1} parent=43 // pred_fallthru
          _
      $region44: #{tpu_custom_call.1} parent=5 // pred_fallthru
        _
      %p670 = scmp.le.s32.totalorder 2, %s20
      // Predicated region
      $region53: #{tpu_custom_call.1} parent=5 // pred_check
        %p671 = pneg %p670
      $region54: #{tpu_custom_call.1} parent=5 // pred_check_branch
        %673 = sbr.rel (%p671) target = $region56
      $region55: #{tpu_custom_call.1} parent=5 // pred_region
        %s674 = ssub.s32 %s20, 2
        // Predicated region
        $region57: #{tpu_custom_call.1} parent=55 // pred_check
          %p675 = pneg %p180
        $region58: #{tpu_custom_call.1} parent=55 // pred_check_branch
          %677 = sbr.rel (%p675) target = $region60
        $region59: #{tpu_custom_call.1} parent=55 // pred_region
          %s678 = sand.u32 %s165, 1
          %s679 = scalar_lea.sflag [#allocation3], %s678
          %s680 = sand.u32 %s165, 1
          %s681 = smul.addr %s680, 8
          %s682 = scalar_lea.vmem [#allocation2], %s681
          %683 = dma.done %s679, 128
        $region60: #{tpu_custom_call.1} parent=55 // pred_fallthru
          _
        // Predicated region
        $region61: #{tpu_custom_call.1} parent=55 // pred_check
          %p684 = pneg %p206
        $region62: #{tpu_custom_call.1} parent=55 // pred_check_branch
          %686 = sbr.rel (%p684) target = $region64
        $region63: #{tpu_custom_call.1} parent=55 // pred_region
          %s687 = sand.u32 %s191, 1
          %s688 = scalar_lea.sflag [#allocation5], %s687
          %s689 = sand.u32 %s191, 1
          %s690 = smul.addr %s689, 8
          %s691 = scalar_lea.vmem [#allocation4], %s690
          %692 = dma.done %s688, 128
        $region64: #{tpu_custom_call.1} parent=55 // pred_fallthru
          _
      $region56: #{tpu_custom_call.1} parent=5 // pred_fallthru
        _
    $region6: #{tpu_custom_call.1} parent=1 // loop_footer
      %s24 = sadd.s32 1, %s20
    $region7: #{tpu_custom_call.1} parent=1 // loop_footer_branch
      %19 = sbr.rel target = $region3
    $region8: #{tpu_custom_call.1} parent=1 // loop_exit
      _
    %693 = vsyncpa [#allocation3], 1
    %s694 = scalar_lea.sflag [#allocation3], 1
    %695 = vsyncpa %s694, 1
    %696 = vsyncpa [#allocation5], 1
    %s697 = scalar_lea.sflag [#allocation5], 1
    %698 = vsyncpa %s697, 1

</llo_original>
